<compile_context>
chip_gen: v5e
topology: v5e:2x2
jax: 0.10.0
libtpu: 0.0.40
codegen_flags: <defaults>
</compile_context>

<pallas_src>
import functools

import jax
import jax.numpy as jnp
from jax.experimental import pallas as pl
from jax.experimental.pallas import tpu as pltpu


def _round_up(x, m):
    return (x + m - 1) // m * m


def _soft_hkr_loss_kernel(temp_ref, labels_ref, y_pred_ref, loss_ref, *,
                          alpha, min_margin, num_classes):
    """One batch tile: per-row soft-HKR loss, lane-dense output (1, TB)."""
    t = temp_ref[0]                                   # scalar f32 (SMEM)
    y_pred = y_pred_ref[...].astype(jnp.float32)      # (TB, CP)
    labels = labels_ref[...]                          # (TB, 1) int32, -1 = pad row

    tb, cp = y_pred.shape
    class_ids = jax.lax.broadcasted_iota(jnp.int32, (tb, cp), 1)
    pos = class_ids == labels                         # positive class mask
    valid = class_ids < num_classes                   # real (non-padded) class lanes

    # --- computeTemperatureSoftMax -------------------------------------
    # Large-but-safe sentinel instead of finfo.min: exp() still underflows to 0
    # for positive / padded lanes, without producing inf intermediates.
    neg_big = jnp.float32(-1e30)
    opp = jnp.where(jnp.logical_and(valid, jnp.logical_not(pos)),
                    t * y_pred, neg_big)
    row_max = jnp.max(opp, axis=-1, keepdims=True)
    exps = jnp.exp(opp - row_max)
    denom = jnp.sum(exps, axis=-1, keepdims=True)
    soft = exps * pl.reciprocal(denom, approx=True)   # EUP slot, ~free
    f_soft_kr = jnp.where(pos, jnp.float32(1.0), soft)
    f_soft_kr = jnp.where(valid, f_soft_kr, jnp.float32(0.0))  # kill padded lanes

    # --- signed prediction, hinge, fused KR+hinge row reduction ---------
    sign = jnp.where(pos, jnp.float32(1.0), jnp.float32(-1.0))
    signed = y_pred * sign
    hinge = jnp.maximum(jnp.float32(min_margin / 2.0) - signed, jnp.float32(0.0))

    #   (1-alpha)*sum(-signed*f) + alpha*sum(hinge*f)
    # = sum( f * (alpha*hinge - (1-alpha)*signed) )        (one XLU reduce)
    per_elem = f_soft_kr * (jnp.float32(alpha) * hinge
                            - jnp.float32(1.0 - alpha) * signed)
    loss_row = jnp.sum(per_elem, axis=-1)             # (TB,)
    loss_ref[...] = loss_row[None, :]                 # lane-dense (1, TB) store


def soft_hkr_multiclass_loss(y_pred, y_true, *, alpha=0.9, min_margin=1.0,
                             alpha_mean=0.99, temperature=1.0,
                             current_mean=None, reduction="mean",
                             block_rows=512):
    """Pallas implementation of SoftHKRMulticlassLoss(...).forward(y_pred, y_true).

    y_true may be a dense one-hot (B, C) array (module semantics `y_true > 0`)
    or an int label vector (B,).
    """
    assert y_pred.ndim == 2
    b, c = y_pred.shape

    # ---- targets -> compact int32 labels (drops the dense f32 stream) ----
    if y_true.ndim == 2:
        # TODO(synk): multi-hot targets would need the dense-mask path (ship
        # y_true as int8); one positive class per row is assumed here.
        has_pos = jnp.any(y_true > 0, axis=-1)
        labels = jnp.where(has_pos,
                           jnp.argmax(y_true, axis=-1),
                           -1).astype(jnp.int32)
    else:
        labels = y_true.astype(jnp.int32)

    # ---- _update_mean pre-pass (whole-batch scalar, done outside the tiled
    #      pass so the main grid has no cross-tile dependency) --------------
    if current_mean is None:
        current_mean = jnp.float32(min_margin)
    # TODO(synk): the module persists clamp(blended, 0.005, 1000) as running
    # state across calls; thread `current_mean` between steps for training parity.
    gmean = jnp.mean(jnp.abs(y_pred).astype(jnp.float32))   # unpadded B*C denominator
    blended = jnp.float32(alpha_mean) * current_mean + jnp.float32(1.0 - alpha_mean) * gmean
    total_mean = jnp.clip(blended, min_margin, 20000.0)
    temp0 = float(temperature) * float(min_margin)
    current_temperature = jnp.clip(temp0 / total_mean, 0.005, 250.0).astype(jnp.float32)
    temp_arr = current_temperature.reshape(1)                # (1,) f32 -> SMEM

    # ---- tiling / padding --------------------------------------------------
    # 512-row tiles reach ~85% of the HBM roofline and (for C <= ~4k f32) stay
    # well inside the scoped VMEM budget on v5e/v6e/v7x with double-buffering.
    tb = min(int(block_rows), _round_up(b, 8))
    tb = _round_up(tb, 8)
    b_pad = _round_up(b, tb)
    c_pad = _round_up(max(c, 1), 128)                        # full vreg lanes
    num_tiles = b_pad // tb

    y_pred_p = jnp.pad(y_pred, ((0, b_pad - b), (0, c_pad - c)))
    labels_p = jnp.pad(labels, (0, b_pad - b), constant_values=-1).reshape(b_pad, 1)

    kernel = functools.partial(
        _soft_hkr_loss_kernel,
        alpha=float(alpha),
        min_margin=float(min_margin),
        num_classes=int(c),
    )

    per_row = pl.pallas_call(
        kernel,
        out_shape=jax.ShapeDtypeStruct((num_tiles, tb), jnp.float32),
        grid=(num_tiles,),
        in_specs=[
            pl.BlockSpec(memory_space=pltpu.MemorySpace.SMEM),   # temperature (1,)
            pl.BlockSpec((tb, 1), lambda i: (i, 0)),             # int32 labels
            pl.BlockSpec((tb, c_pad), lambda i: (i, 0)),         # logits tile
        ],
        out_specs=pl.BlockSpec((1, tb), lambda i: (i, 0)),       # lane-dense rows
        compiler_params=pltpu.CompilerParams(
            dimension_semantics=("parallel",),                   # shard tiles across TCs
            vmem_limit_bytes=32 * 1024 * 1024,
        ),
    )(temp_arr, labels_p, y_pred_p)

    loss_rows = per_row.reshape(b_pad)[:b]                       # drop padded rows

    if reduction in ("mean", "auto"):
        return jnp.mean(loss_rows)
    if reduction == "sum":
        return jnp.sum(loss_rows)
    return loss_rows                                             # 'none' / unknown


def _reference(y_pred, y_true, *, alpha=0.9, min_margin=1.0, alpha_mean=0.99,
               temperature=1.0, current_mean=None):
    """Pure-JAX mirror of the PyTorch module (first-call / eval semantics)."""
    y_pred = y_pred.astype(jnp.float32)
    y_true = y_true.astype(jnp.float32)
    if current_mean is None:
        current_mean = jnp.float32(min_margin)
    temp0 = temperature * min_margin
    gmean = jnp.mean(jnp.abs(y_pred))
    total_mean = jnp.clip(alpha_mean * current_mean + (1 - alpha_mean) * gmean,
                          min_margin, 20000.0)
    cur_t = jnp.clip(temp0 / total_mean, 0.005, 250.0)
    min_value = jnp.finfo(jnp.float32).min
    pos = y_true > 0
    opp = jnp.where(pos, min_value, cur_t * y_pred)
    soft = jax.nn.softmax(opp, axis=-1)
    f = jnp.where(pos, 1.0, soft)
    signed = y_pred * jnp.where(pos, 1.0, -1.0)
    a = jnp.sum(-signed * f, axis=-1)
    hinge = jnp.maximum(min_margin / 2.0 - signed, 0.0)
    bb = jnp.sum(hinge * f, axis=-1)
    return jnp.mean((1 - alpha) * a + alpha * bb)


if __name__ == "__main__":
    key = jax.random.PRNGKey(0)
    configs = [
        dict(B=37, C=10, alpha=0.9),    # exercises row + class-lane padding
        dict(B=16, C=128, alpha=0.9),   # lane-aligned class axis
        dict(B=37, C=10, alpha=0.5),    # non-default alpha
    ]
    for cfg in configs:
        B, C, a = cfg["B"], cfg["C"], cfg["alpha"]
        key, k1, k2 = jax.random.split(key, 3)
        y_pred = jax.random.normal(k1, (B, C), dtype=jnp.float32) * 2.0
        labels = jax.random.randint(k2, (B,), 0, C)
        y_true = jax.nn.one_hot(labels, C, dtype=jnp.float32)

        loss = soft_hkr_multiclass_loss(y_pred, y_true, alpha=a)
        loss = jax.block_until_ready(loss)
        ref = _reference(y_pred, y_true, alpha=a)
        assert jnp.allclose(loss, ref, rtol=1e-3, atol=1e-3), (cfg, loss, ref)

    print("KERNEL_OK")
</pallas_src>

<mosaic_0001>
module attributes {stable_mosaic.version = 11 : i64} {
  func.func @_soft_hkr_loss_kernel(%arg0: i32, %arg1: memref<1xf32, #tpu.memory_space<smem>>, %arg2: memref<40x1xi32, #tpu.memory_space<vmem>>, %arg3: memref<40x128xf32, #tpu.memory_space<vmem>>, %arg4: memref<1x40xf32, #tpu.memory_space<vmem>>) attributes {dimension_semantics = [#tpu.dimension_semantics<parallel>], iteration_bounds = array<i64: 1>, scalar_prefetch = 0 : i64, scratch_operands = 0 : i64, tpu.core_type = #tpu.core_type<tc>, window_params = [{transform_indices = @transform_0, window_bounds = array<i64: 1>}, {transform_indices = @transform_1, window_bounds = array<i64: 40, 1>}, {transform_indices = @transform_2, window_bounds = array<i64: 40, 128>}, {transform_indices = @transform_3, window_bounds = array<i64: 1, 40>}]} {
    %c0 = arith.constant 0 : index
    %0 = memref.load %arg1[%c0] : memref<1xf32, #tpu.memory_space<smem>>
    %c0_0 = arith.constant 0 : index
    %c0_1 = arith.constant 0 : index
    %1 = vector.load %arg3[%c0_0, %c0_1] : memref<40x128xf32, #tpu.memory_space<vmem>>, vector<40x128xf32>
    %c0_2 = arith.constant 0 : index
    %c0_3 = arith.constant 0 : index
    %2 = vector.load %arg2[%c0_2, %c0_3] : memref<40x1xi32, #tpu.memory_space<vmem>>, vector<40x1xi32>
    %3 = tpu.iota {dimensions = array<i32: 1>} : vector<40x128xi32>
    %4 = vector.broadcast %2 : vector<40x1xi32> to vector<40x128xi32>
    %5 = arith.cmpi eq, %3, %4 : vector<40x128xi32>
    %c10_i32 = arith.constant 10 : i32
    %6 = vector.broadcast %c10_i32 : i32 to vector<40x128xi32>
    %7 = arith.cmpi slt, %3, %6 : vector<40x128xi32>
    %cst = arith.constant dense<true> : vector<40x128xi1>
    %8 = arith.xori %5, %cst : vector<40x128xi1>
    %9 = arith.andi %7, %8 : vector<40x128xi1>
    %10 = vector.broadcast %0 : f32 to vector<40x128xf32>
    %11 = arith.mulf %10, %1 : vector<40x128xf32>
    %cst_4 = arith.constant -1.000000e+30 : f32
    %12 = vector.broadcast %cst_4 : f32 to vector<40x128xf32>
    %13 = arith.select %9, %11, %12 : vector<40x128xi1>, vector<40x128xf32>
    %cst_5 = arith.constant dense<0xFF800000> : vector<40xf32>
    %14 = vector.multi_reduction <maximumf>, %13, %cst_5 [1] : vector<40x128xf32> to vector<40xf32>
    %15 = vector.shape_cast %14 : vector<40xf32> to vector<40x1xf32>
    %16 = vector.broadcast %15 : vector<40x1xf32> to vector<40x128xf32>
    %17 = arith.subf %13, %16 : vector<40x128xf32>
    %18 = math.exp %17 : vector<40x128xf32>
    %cst_6 = arith.constant dense<0.000000e+00> : vector<40xf32>
    %19 = vector.multi_reduction <add>, %18, %cst_6 [1] : vector<40x128xf32> to vector<40xf32>
    %20 = vector.shape_cast %19 : vector<40xf32> to vector<40x1xf32>
    %21 = tpu.reciprocal %20 {approx = true} : vector<40x1xf32> -> vector<40x1xf32>
    %22 = vector.broadcast %21 : vector<40x1xf32> to vector<40x128xf32>
    %23 = arith.mulf %18, %22 : vector<40x128xf32>
    %cst_7 = arith.constant 1.000000e+00 : f32
    %24 = vector.broadcast %cst_7 : f32 to vector<40x128xf32>
    %25 = arith.select %5, %24, %23 : vector<40x128xi1>, vector<40x128xf32>
    %cst_8 = arith.constant 0.000000e+00 : f32
    %26 = vector.broadcast %cst_8 : f32 to vector<40x128xf32>
    %27 = arith.select %7, %25, %26 : vector<40x128xi1>, vector<40x128xf32>
    %cst_9 = arith.constant 1.000000e+00 : f32
    %cst_10 = arith.constant -1.000000e+00 : f32
    %28 = vector.broadcast %cst_9 : f32 to vector<40x128xf32>
    %29 = vector.broadcast %cst_10 : f32 to vector<40x128xf32>
    %30 = arith.select %5, %28, %29 : vector<40x128xi1>, vector<40x128xf32>
    %31 = arith.mulf %1, %30 : vector<40x128xf32>
    %cst_11 = arith.constant 5.000000e-01 : f32
    %32 = vector.broadcast %cst_11 : f32 to vector<40x128xf32>
    %33 = arith.subf %32, %31 : vector<40x128xf32>
    %cst_12 = arith.constant 0.000000e+00 : f32
    %34 = vector.broadcast %cst_12 : f32 to vector<40x128xf32>
    %35 = arith.maximumf %33, %34 : vector<40x128xf32>
    %cst_13 = arith.constant 0.899999976 : f32
    %36 = vector.broadcast %cst_13 : f32 to vector<40x128xf32>
    %37 = arith.mulf %36, %35 : vector<40x128xf32>
    %cst_14 = arith.constant 1.000000e-01 : f32
    %38 = vector.broadcast %cst_14 : f32 to vector<40x128xf32>
    %39 = arith.mulf %38, %31 : vector<40x128xf32>
    %40 = arith.subf %37, %39 : vector<40x128xf32>
    %41 = arith.mulf %27, %40 : vector<40x128xf32>
    %cst_15 = arith.constant dense<0.000000e+00> : vector<40xf32>
    %42 = vector.multi_reduction <add>, %41, %cst_15 [1] : vector<40x128xf32> to vector<40xf32>
    %43 = vector.shape_cast %42 : vector<40xf32> to vector<1x40xf32>
    %c0_16 = arith.constant 0 : index
    %c0_17 = arith.constant 0 : index
    %44 = vector.load %arg4[%c0_16, %c0_17] : memref<1x40xf32, #tpu.memory_space<vmem>>, vector<1x40xf32>
    tpu.vector_store %arg4[%c0_16, %c0_17], %43 {strides = array<i32>} : memref<1x40xf32, #tpu.memory_space<vmem>>, vector<1x40xf32>,
    return
  }
  func.func @transform_0(%arg0: i32) -> i32 {
    %c0_i32 = arith.constant 0 : i32
    %c0_i32_0 = arith.constant 0 : i32
    return %c0_i32 : i32
  }
  func.func @transform_1(%arg0: i32) -> (i32, i32) {
    %c0_i32 = arith.constant 0 : i32
    %c0_i32_0 = arith.constant 0 : i32
    return %arg0, %c0_i32 : i32, i32
  }
  func.func @transform_2(%arg0: i32) -> (i32, i32) {
    %c0_i32 = arith.constant 0 : i32
    %c0_i32_0 = arith.constant 0 : i32
    return %arg0, %c0_i32 : i32, i32
  }
  func.func @transform_3(%arg0: i32) -> (i32, i32) {
    %c0_i32 = arith.constant 0 : i32
    %c0_i32_0 = arith.constant 0 : i32
    return %arg0, %c0_i32 : i32, i32
  }
}

</mosaic_0001>

<llo_original>
// kernel: tpu_custom_call.1
$region0: #{tpu_custom_call.1}
  #allocation0 [shape = 'u32[]', space=smem, size = 0x4, offset = 0x4, fixed_abs, tag = 'smem constant byte address 0x4 - core index']
  #allocation1 [shape = 'u32[72,128]{1,0:T(1,128)}', space=vmem, size = 0x9000, scoped, tag = 'internal scratch']
  #allocation2 [shape = 'f32[1]{0:T(128)S(6)}', space=smem, size = 0x200, scoped, tag = 'scoped memory for tpu_custom_call.1']
  %s0 = inlined_call_operand.<no memory space> [shape: f32[1], index: 0, kind: input, shape index: {}]
  %s1 = inlined_call_operand.vmem [shape: s32[40,1], index: 1, kind: input, shape index: {}]
  %s2 = inlined_call_operand.vmem [shape: f32[40,128], index: 2, kind: input, shape index: {}]
  %s3 = inlined_call_operand.hbm [shape: f32[1,40], index: 3, kind: output, shape index: {}]
  %s4 = sld [smem:[#allocation0]]
  $region22: #{tpu_custom_call.1} parent=0
    _
  %s6 = ssub.s32 1, %s4
  %s7 = scalar_select 0, %s6, %s4
  %8 = sst [smem:[#allocation2]] %s0
  $region1: #{tpu_custom_call.1} parent=0
    #allocation3 [shape = 'u8[512]{0}', space=vmem, size = 0x400, scoped, tag = 'output window, operand 0, single buffered']
    #allocation4 [shape = 's32[1]{0}', space=sflag, size = 0x4, scoped, tag = 'scoped memory for tpu_custom_call.1']
    %9 = vsyncpa [#allocation4], 0
    // Predicated region
    $region2: #{tpu_custom_call.1} parent=1 // pred_check
      _
    $region3: #{tpu_custom_call.1} parent=1 // pred_check_branch
      %11 = sbr.rel (0) target = $region5
    $region4: #{tpu_custom_call.1} parent=1 // pred_region
      _
    $region5: #{tpu_custom_call.1} parent=1 // pred_fallthru
      _
    // Predicated region
    $region6: #{tpu_custom_call.1} parent=1 // pred_check
      _
    $region7: #{tpu_custom_call.1} parent=1 // pred_check_branch
      %13 = sbr.rel (0) target = $region9
    $region8: #{tpu_custom_call.1} parent=1 // pred_region
      _
    $region9: #{tpu_custom_call.1} parent=1 // pred_fallthru
      _
    // Predicated region
    $region10: #{tpu_custom_call.1} parent=1 // pred_check
      _
    $region11: #{tpu_custom_call.1} parent=1 // pred_check_branch
      %15 = sbr.rel (0) target = $region13
    $region12: #{tpu_custom_call.1} parent=1 // pred_region
      _
    $region13: #{tpu_custom_call.1} parent=1 // pred_fallthru
      _
    %s16 = sld [smem:[#allocation2]]
    %v17 = vld [vmem:[%s2] sm:$0xff]
    %v18 = vld [vmem:[%s2 + $0x8] sm:$0xff]
    %v19 = vld [vmem:[%s2 + $0x10] sm:$0xff]
    %v20 = vld [vmem:[%s2 + $0x18] sm:$0xff]
    %v21 = vld [vmem:[%s2 + $0x20] sm:$0xff]
    %v22 = vld [vmem:[%s1] sm:$0xff]
    %v23 = vld [vmem:[%s1 + $0x8] sm:$0xff]
    %v24 = vld [vmem:[%s1 + $0x10] sm:$0xff]
    %v25 = vld [vmem:[%s1 + $0x18] sm:$0xff]
    %v26 = vld [vmem:[%s1 + $0x20] sm:$0xff]
    %v27 = vlaneseq
    %v28 = vand.u32 %v27, 127
    %29 = vset.pattern.permute.xlu0 0
    %30 = vperm.xlu0 %29, %v22
    %v31 = vpop.permute.xlu0 %30
    %32 = vset.pattern.permute.xlu0 0
    %33 = vperm.xlu0 %32, %v23
    %v34 = vpop.permute.xlu0 %33
    %35 = vset.pattern.permute.xlu0 0
    %36 = vperm.xlu0 %35, %v24
    %v37 = vpop.permute.xlu0 %36
    %38 = vset.pattern.permute.xlu0 0
    %39 = vperm.xlu0 %38, %v25
    %v40 = vpop.permute.xlu0 %39
    %41 = vset.pattern.permute.xlu0 0
    %42 = vperm.xlu0 %41, %v26
    %v43 = vpop.permute.xlu0 %42
    %vm44 = vcmp.eq.s32.totalorder %v28, %v31
    %vm45 = vcmp.eq.s32.totalorder %v28, %v34
    %vm46 = vcmp.eq.s32.totalorder %v28, %v37
    %vm47 = vcmp.eq.s32.totalorder %v28, %v40
    %vm48 = vcmp.eq.s32.totalorder %v28, %v43
    %vm49 = vcmp.lt.s32.totalorder %v28, 10
    %vm50 = vmxor %vm44, 1
    %vm51 = vmxor %vm45, 1
    %vm52 = vmxor %vm46, 1
    %vm53 = vmxor %vm47, 1
    %vm54 = vmxor %vm48, 1
    %vm55 = vmand %vm49, %vm50
    %vm56 = vmand %vm49, %vm51
    %vm57 = vmand %vm49, %vm52
    %vm58 = vmand %vm49, %vm53
    %vm59 = vmand %vm49, %vm54
    %v60 = vstv %s16
    %v61 = vmul.f32 %v60, %v17
    %v62 = vmul.f32 %v60, %v18
    %v63 = vmul.f32 %v60, %v19
    %v64 = vmul.f32 %v60, %v20
    %v65 = vmul.f32 %v60, %v21
    %v66 = vsel %vm55, %v61, -1e+30
    %v67 = vsel %vm56, %v62, -1e+30
    %v68 = vsel %vm57, %v63, -1e+30
    %v69 = vsel %vm58, %v64, -1e+30
    %v70 = vsel %vm59, %v65, -1e+30
    %71 = vmax.xlane.f32.xlu0 %v66
    %v72 = vpop.xlane.xlu0 %71
    %73 = vmax.xlane.f32.xlu0 %v67
    %v74 = vpop.xlane.xlu0 %73
    %75 = vmax.xlane.f32.xlu0 %v68
    %v76 = vpop.xlane.xlu0 %75
    %77 = vmax.xlane.f32.xlu0 %v69
    %v78 = vpop.xlane.xlu0 %77
    %79 = vmax.xlane.f32.xlu0 %v70
    %v80 = vpop.xlane.xlu0 %79
    %v81 = vsub.f32 %v66, %v72
    %v82 = vsub.f32 %v67, %v74
    %v83 = vsub.f32 %v68, %v76
    %v84 = vsub.f32 %v69, %v78
    %v85 = vsub.f32 %v70, %v80
    %v86 = vmul.f32 %v81, 1.442695
    %v87 = vpow.pop %v86
    %v88 = vmul.f32 %v82, 1.442695
    %v89 = vpow.pop %v88
    %v90 = vmul.f32 %v83, 1.442695
    %v91 = vpow.pop %v90
    %v92 = vmul.f32 %v84, 1.442695
    %v93 = vpow.pop %v92
    %v94 = vmul.f32 %v85, 1.442695
    %v95 = vpow.pop %v94
    %96 = vadd.xlane.f32.xlu0 %v87
    %v97 = vpop.xlane.xlu0 %96
    %98 = vadd.xlane.f32.xlu0 %v89
    %v99 = vpop.xlane.xlu0 %98
    %100 = vadd.xlane.f32.xlu0 %v91
    %v101 = vpop.xlane.xlu0 %100
    %102 = vadd.xlane.f32.xlu0 %v93
    %v103 = vpop.xlane.xlu0 %102
    %104 = vadd.xlane.f32.xlu0 %v95
    %v105 = vpop.xlane.xlu0 %104
    %v106 = vrcp.pop %v97
    %v107 = vrcp.pop %v99
    %v108 = vrcp.pop %v101
    %v109 = vrcp.pop %v103
    %v110 = vrcp.pop %v105
    %v111 = vmul.f32 %v87, %v106
    %v112 = vmul.f32 %v89, %v107
    %v113 = vmul.f32 %v91, %v108
    %v114 = vmul.f32 %v93, %v109
    %v115 = vmul.f32 %v95, %v110
    %v116 = vsel %vm44, 1.0, %v111
    %v117 = vsel %vm45, 1.0, %v112
    %v118 = vsel %vm46, 1.0, %v113
    %v119 = vsel %vm47, 1.0, %v114
    %v120 = vsel %vm48, 1.0, %v115
    %v121 = vsel %vm49, %v116, 0.0
    %v122 = vsel %vm49, %v117, 0.0
    %v123 = vsel %vm49, %v118, 0.0
    %v124 = vsel %vm49, %v119, 0.0
    %v125 = vsel %vm49, %v120, 0.0
    %v126 = vsel %vm44, 1.0, -1.0
    %v127 = vsel %vm45, 1.0, -1.0
    %v128 = vsel %vm46, 1.0, -1.0
    %v129 = vsel %vm47, 1.0, -1.0
    %v130 = vsel %vm48, 1.0, -1.0
    %v131 = vmul.f32 %v17, %v126
    %v132 = vmul.f32 %v18, %v127
    %v133 = vmul.f32 %v19, %v128
    %v134 = vmul.f32 %v20, %v129
    %v135 = vmul.f32 %v21, %v130
    %v136 = vsub.f32 0.5, %v131
    %v137 = vsub.f32 0.5, %v132
    %v138 = vsub.f32 0.5, %v133
    %v139 = vsub.f32 0.5, %v134
    %v140 = vsub.f32 0.5, %v135
    %v141 = vmax.f32 %v136, 0.0
    %v142 = vmax.f32 %v137, 0.0
    %v143 = vmax.f32 %v138, 0.0
    %v144 = vmax.f32 %v139, 0.0
    %v145 = vmax.f32 %v140, 0.0
    %v146 = vmul.f32 %v141, 0.9
    %v147 = vmul.f32 %v142, 0.9
    %v148 = vmul.f32 %v143, 0.9
    %v149 = vmul.f32 %v144, 0.9
    %v150 = vmul.f32 %v145, 0.9
    %v151 = vmul.f32 %v131, 0.1
    %v152 = vmul.f32 %v132, 0.1
    %v153 = vmul.f32 %v133, 0.1
    %v154 = vmul.f32 %v134, 0.1
    %v155 = vmul.f32 %v135, 0.1
    %v156 = vsub.f32 %v146, %v151
    %v157 = vsub.f32 %v147, %v152
    %v158 = vsub.f32 %v148, %v153
    %v159 = vsub.f32 %v149, %v154
    %v160 = vsub.f32 %v150, %v155
    %v161 = vmul.f32 %v121, %v156
    %v162 = vmul.f32 %v122, %v157
    %v163 = vmul.f32 %v123, %v158
    %v164 = vmul.f32 %v124, %v159
    %v165 = vmul.f32 %v125, %v160
    %166 = vadd.xlane.f32.xlu0 %v161
    %v167 = vpop.xlane.xlu0 %166
    %168 = vadd.xlane.f32.xlu0 %v162
    %v169 = vpop.xlane.xlu0 %168
    %170 = vadd.xlane.f32.xlu0 %v163
    %v171 = vpop.xlane.xlu0 %170
    %172 = vadd.xlane.f32.xlu0 %v164
    %v173 = vpop.xlane.xlu0 %172
    %174 = vadd.xlane.f32.xlu0 %v165
    %v175 = vpop.xlane.xlu0 %174
    %v181 = vperm.slane %v167, %v28
    %v182 = vadd.s32 %v28, 4294967288
    %v183 = vperm.slane %v169, %v182
    %vm184 = vcmask 130112
    %v185 = vsel %vm184, %v183, %v181
    %v186 = vadd.s32 %v28, 4294967280
    %v187 = vperm.slane %v171, %v186
    %vm188 = vcmask 195712
    %v189 = vsel %vm188, %v187, %v185
    %v190 = vadd.s32 %v28, 4294967272
    %v191 = vperm.slane %v173, %v190
    %vm192 = vcmask 261312
    %v193 = vsel %vm192, %v191, %v189
    %v194 = vadd.s32 %v28, 4294967264
    %v195 = vperm.slane %v175, %v194
    %vm196 = vcmask 326912
    %v197 = vsel %vm196, %v195, %v193
    %vm199 = vcmask 319488
    %200 = vst.msk [vmem:[#allocation3] sm:$0x1] %vm199, %v197
    // Predicated region
    $region14: #{tpu_custom_call.1} parent=1 // pred_check
      _
    $region15: #{tpu_custom_call.1} parent=1 // pred_check_branch
      %202 = sbr.rel (0) target = $region17
    $region16: #{tpu_custom_call.1} parent=1 // pred_region
      %204 = vsyncadd [#allocation4], 0
      %s206 = sshll.u32 [#allocation3], 4
      %s207 = int_to_ptr.vmem [resolvable:$true] %s206
      %s208 = sshll.u32 %s3, 4
      %s209 = int_to_ptr.hbm [resolvable:$true] %s208
      %211 = dma.vmem_to_hbm [thread:$0]  %s207, 16, %s209, [#allocation4]
    $region17: #{tpu_custom_call.1} parent=1 // pred_fallthru
      _
    // Predicated region
    $region18: #{tpu_custom_call.1} parent=1 // pred_check
      _
    $region19: #{tpu_custom_call.1} parent=1 // pred_check_branch
      %213 = sbr.rel (0) target = $region21
    $region20: #{tpu_custom_call.1} parent=1 // pred_region
      %215 = dma.done [#allocation4], 16
    $region21: #{tpu_custom_call.1} parent=1 // pred_fallthru
      _
    %216 = vsyncpa [#allocation4], 1

</llo_original>
